<compile_context>
chip_gen: v7x
topology: tpu7x:2x2x1
jax: 0.10.0
libtpu: 0.0.40
codegen_flags: <defaults>
</compile_context>

<pallas_src>
import jax
import jax.numpy as jnp
from jax.experimental import pallas as pl
from jax.experimental.pallas import tpu as pltpu

BATCH = 4      # batch_size in the reference script
FEATS = 4      # features / Linear out_features
LANES = 128    # lane-dense padding of the feature axis

# Weight slab layout (W_ROWS x LANES), chosen so nothing crosses the
# (8,128) sublane-tile edge:  rows 0..3 = Wa^T, rows 4..7 = Wb^T (first tile),
# row 8 = bias (second tile), rows 9..15 = zero padding.
W_ROWS = 16
ROW_WA = 0
ROW_WB = FEATS
ROW_BIAS = 2 * FEATS

BLOCK_ROWS_DEFAULT = 256   # rows (sublanes) per grid step; f32 block = 128 KiB


def _model_kernel(w_ref, x_ref, o_ref):
    """Whole forward chain, VPU/EUP only; all ops full-vreg (rows x 128).

    w_ref : (W_ROWS, LANES) f32 -- [Wa^T ; Wb^T ; bias ; pad], grid-resident
    x_ref : (rows,  LANES) f32 -- x rows in lanes 0..3, zero elsewhere
    o_ref : (rows,  LANES) f32 -- result rows in lanes 0..3
    """
    w = w_ref[...]
    x = x_ref[...]
    rows = x.shape[0]

    wat = w[ROW_WA:ROW_WA + FEATS, :]          # Wa^T  (4, 128)
    wbt = w[ROW_WB:ROW_WB + FEATS, :]          # Wb^T  (4, 128)
    bias = w[ROW_BIAS:ROW_BIAS + 1, :]         # bias  (1, 128)

    # xa = x @ Wa^T + b, unrolled broadcast-FMAs on the VPU (a 4-deep
    # contraction would waste a full MXU fill/drain).  Off the sigmoid chain.
    xa = jnp.broadcast_to(bias, (rows, LANES))
    for k in range(FEATS):
        xa = xa + x[:, k:k + 1] * wat[k:k + 1, :]

    # Hoist the constant Wb^T row broadcasts out of the dependent
    # sigmoid -> linear recurrence (JAX does not CSE broadcast_in_dim).
    wb_rows = [jnp.broadcast_to(wbt[k:k + 1, :], (rows, LANES))
               for k in range(FEATS)]

    def linear_cat(y):
        # linear(cat([x, y], 1)) == xa + y @ Wb^T   (row-wise independent)
        acc = xa
        for k in range(FEATS):
            acc = acc + y[:, k:k + 1] * wb_rows[k]
        return acc

    # TODO(synk): original torch code calls Linear(4,4) on an 8-wide cat,
    # which would raise; this kernel uses the consistent W=[Wa|Wb] repair.
    y = jax.nn.sigmoid(xa)                 # y = sigmoid(linear(x))
    y = jax.nn.sigmoid(linear_cat(y))      # y = sigmoid(linear(cat([x, y], 1)))
    y = jax.nn.sigmoid(linear_cat(y))      # y = sigmoid(linear(cat([x, y], 1)))
    o_ref[...] = linear_cat(y)             # final linear, no sigmoid (f32)


def pack_weights(w, b):
    """w: (FEATS, 2*FEATS) torch-style [out, in]; b: (FEATS,) -> (16,128) slab.

    Constant per model: build once (outside the serving loop) and reuse.
    """
    slab = jnp.zeros((W_ROWS, LANES), jnp.float32)
    wt = jnp.transpose(w).astype(jnp.float32)          # (2*FEATS, FEATS)
    slab = slab.at[:2 * FEATS, :FEATS].set(wt)          # Wa^T ; Wb^T
    slab = slab.at[ROW_BIAS, :FEATS].set(b.astype(jnp.float32))
    return slab


def model_forward(w_slab, x_rows, *, block_rows):
    """x_rows: (R, 128) f32, R a multiple of block_rows; returns (R, 128)."""
    R = x_rows.shape[0]
    assert R % block_rows == 0 and block_rows % 8 == 0
    n_blocks = R // block_rows
    return pl.pallas_call(
        _model_kernel,
        out_shape=jax.ShapeDtypeStruct((R, LANES), jnp.float32),
        grid=(n_blocks,),
        in_specs=[
            # Weights/bias: constant block index -> DMA'd once, stays resident.
            pl.BlockSpec((W_ROWS, LANES), lambda i: (0, 0)),
            # Per-step x block (lane-dense, double-buffered by the pipeline).
            pl.BlockSpec((block_rows, LANES), lambda i: (i, 0)),
        ],
        out_specs=pl.BlockSpec((block_rows, LANES), lambda i: (i, 0)),
        compiler_params=pltpu.CompilerParams(
            dimension_semantics=("parallel",)),   # v7x: 2 TCs split the grid
        cost_estimate=pl.CostEstimate(
            flops=R * 4 * 2 * FEATS * FEATS,        # 4 tiny "matmuls" per row
            transcendentals=3 * R * FEATS,          # 3 sigmoids per row
            bytes_accessed=(W_ROWS + 2 * R) * LANES * 4),
    )(w_slab, x_rows)


def _round_up(v, m):
    return (v + m - 1) // m * m


def run_model(x_problems, w, b, *, block_rows=BLOCK_ROWS_DEFAULT):
    """x_problems: (..., FEATS).  All rows are independent; leading dims are
    flattened onto the sublane axis, padded, processed in one pallas_call."""
    lead_shape = x_problems.shape[:-1]
    x2 = x_problems.reshape(-1, FEATS).astype(jnp.float32)
    R = x2.shape[0]
    br = min(_round_up(block_rows, 8), _round_up(R, 8))
    Rp = _round_up(R, br)
    x_rows = jnp.zeros((Rp, LANES), jnp.float32).at[:R, :FEATS].set(x2)
    w_slab = pack_weights(w, b)   # constant; cache outside a serving loop
    out = model_forward(w_slab, x_rows, block_rows=br)
    return out[:R, :FEATS].reshape(*lead_shape, FEATS)


def _reference(x, w, b):
    """Pure-JAX reference of the same (shape-repaired) semantics."""
    wa = w[:, :FEATS]
    wb = w[:, FEATS:]
    xa = x @ wa.T + b
    y = jax.nn.sigmoid(xa)
    y = jax.nn.sigmoid(xa + y @ wb.T)
    y = jax.nn.sigmoid(xa + y @ wb.T)
    return xa + y @ wb.T


if __name__ == "__main__":
    key = jax.random.PRNGKey(0)
    kx, kw, kb, kbig = jax.random.split(key, 4)

    x = jax.random.normal(kx, (BATCH, FEATS), dtype=jnp.float32)
    # Deterministic "Linear" parameters (uniform like torch's default init).
    bound = 1.0 / (2 * FEATS) ** 0.5
    w = jax.random.uniform(kw, (FEATS, 2 * FEATS), minval=-bound, maxval=bound,
                           dtype=jnp.float32)
    b = jax.random.uniform(kb, (FEATS,), minval=-bound, maxval=bound,
                           dtype=jnp.float32)

    # 1) Single problem: exactly the module's (4, 4) input.
    out = jax.block_until_ready(run_model(x, w, b))
    ref = _reference(x, w, b)
    assert out.shape == (BATCH, FEATS)
    assert jnp.allclose(out, ref, atol=1e-5, rtol=1e-5)

    # 2) Batched path: 16 independent problems behind one pallas_call; small
    #    block_rows to exercise a multi-step ("parallel") grid.
    xs = jax.random.normal(kbig, (16, BATCH, FEATS), dtype=jnp.float32)
    outs = jax.block_until_ready(run_model(xs, w, b, block_rows=32))
    refs = jax.vmap(lambda xi: _reference(xi, w, b))(xs)
    assert outs.shape == xs.shape
    assert jnp.allclose(outs, refs, atol=1e-5, rtol=1e-5)

    print("KERNEL_OK")
</pallas_src>

<mosaic_0001>
module attributes {stable_mosaic.version = 11 : i64} {
  func.func @_model_kernel(%arg0: i32, %arg1: memref<16x128xf32, #tpu.memory_space<vmem>>, %arg2: memref<8x128xf32, #tpu.memory_space<vmem>>, %arg3: memref<8x128xf32, #tpu.memory_space<vmem>>) attributes {dimension_semantics = [#tpu.dimension_semantics<parallel>], iteration_bounds = array<i64: 1>, scalar_prefetch = 0 : i64, scratch_operands = 0 : i64, tpu.core_type = #tpu.core_type<tc>, window_params = [{pipeline_mode = #tpu.pipeline_mode<synchronous>, transform_indices = @transform_0, window_bounds = array<i64: 16, 128>}, {transform_indices = @transform_1, window_bounds = array<i64: 8, 128>}, {transform_indices = @transform_2, window_bounds = array<i64: 8, 128>}]} {
    %c0 = arith.constant 0 : index
    %c0_0 = arith.constant 0 : index
    %0 = vector.load %arg1[%c0, %c0_0] : memref<16x128xf32, #tpu.memory_space<vmem>>, vector<16x128xf32>
    %c0_1 = arith.constant 0 : index
    %c0_2 = arith.constant 0 : index
    %1 = vector.load %arg2[%c0_1, %c0_2] : memref<8x128xf32, #tpu.memory_space<vmem>>, vector<8x128xf32>
    %2 = vector.extract_strided_slice %0 {offsets = [0, 0], sizes = [4, 128], strides = [1, 1]} : vector<16x128xf32> to vector<4x128xf32>
    %3 = vector.extract_strided_slice %0 {offsets = [4, 0], sizes = [4, 128], strides = [1, 1]} : vector<16x128xf32> to vector<4x128xf32>
    %4 = vector.extract_strided_slice %0 {offsets = [8, 0], sizes = [1, 128], strides = [1, 1]} : vector<16x128xf32> to vector<1x128xf32>
    %5 = vector.shape_cast %4 : vector<1x128xf32> to vector<1x128xf32>
    %6 = vector.broadcast %5 : vector<1x128xf32> to vector<8x128xf32>
    %7 = vector.extract_strided_slice %1 {offsets = [0, 0], sizes = [8, 1], strides = [1, 1]} : vector<8x128xf32> to vector<8x1xf32>
    %8 = vector.extract_strided_slice %2 {offsets = [0, 0], sizes = [1, 128], strides = [1, 1]} : vector<4x128xf32> to vector<1x128xf32>
    %9 = vector.broadcast %7 : vector<8x1xf32> to vector<8x128xf32>
    %10 = vector.broadcast %8 : vector<1x128xf32> to vector<8x128xf32>
    %11 = arith.mulf %9, %10 : vector<8x128xf32>
    %12 = arith.addf %6, %11 : vector<8x128xf32>
    %13 = vector.extract_strided_slice %1 {offsets = [0, 1], sizes = [8, 1], strides = [1, 1]} : vector<8x128xf32> to vector<8x1xf32>
    %14 = vector.extract_strided_slice %2 {offsets = [1, 0], sizes = [1, 128], strides = [1, 1]} : vector<4x128xf32> to vector<1x128xf32>
    %15 = vector.broadcast %13 : vector<8x1xf32> to vector<8x128xf32>
    %16 = vector.broadcast %14 : vector<1x128xf32> to vector<8x128xf32>
    %17 = arith.mulf %15, %16 : vector<8x128xf32>
    %18 = arith.addf %12, %17 : vector<8x128xf32>
    %19 = vector.extract_strided_slice %1 {offsets = [0, 2], sizes = [8, 1], strides = [1, 1]} : vector<8x128xf32> to vector<8x1xf32>
    %20 = vector.extract_strided_slice %2 {offsets = [2, 0], sizes = [1, 128], strides = [1, 1]} : vector<4x128xf32> to vector<1x128xf32>
    %21 = vector.broadcast %19 : vector<8x1xf32> to vector<8x128xf32>
    %22 = vector.broadcast %20 : vector<1x128xf32> to vector<8x128xf32>
    %23 = arith.mulf %21, %22 : vector<8x128xf32>
    %24 = arith.addf %18, %23 : vector<8x128xf32>
    %25 = vector.extract_strided_slice %1 {offsets = [0, 3], sizes = [8, 1], strides = [1, 1]} : vector<8x128xf32> to vector<8x1xf32>
    %26 = vector.extract_strided_slice %2 {offsets = [3, 0], sizes = [1, 128], strides = [1, 1]} : vector<4x128xf32> to vector<1x128xf32>
    %27 = vector.broadcast %25 : vector<8x1xf32> to vector<8x128xf32>
    %28 = vector.broadcast %26 : vector<1x128xf32> to vector<8x128xf32>
    %29 = arith.mulf %27, %28 : vector<8x128xf32>
    %30 = arith.addf %24, %29 : vector<8x128xf32>
    %31 = vector.extract_strided_slice %3 {offsets = [0, 0], sizes = [1, 128], strides = [1, 1]} : vector<4x128xf32> to vector<1x128xf32>
    %32 = vector.shape_cast %31 : vector<1x128xf32> to vector<1x128xf32>
    %33 = vector.broadcast %32 : vector<1x128xf32> to vector<8x128xf32>
    %34 = vector.extract_strided_slice %3 {offsets = [1, 0], sizes = [1, 128], strides = [1, 1]} : vector<4x128xf32> to vector<1x128xf32>
    %35 = vector.shape_cast %34 : vector<1x128xf32> to vector<1x128xf32>
    %36 = vector.broadcast %35 : vector<1x128xf32> to vector<8x128xf32>
    %37 = vector.extract_strided_slice %3 {offsets = [2, 0], sizes = [1, 128], strides = [1, 1]} : vector<4x128xf32> to vector<1x128xf32>
    %38 = vector.shape_cast %37 : vector<1x128xf32> to vector<1x128xf32>
    %39 = vector.broadcast %38 : vector<1x128xf32> to vector<8x128xf32>
    %40 = vector.extract_strided_slice %3 {offsets = [3, 0], sizes = [1, 128], strides = [1, 1]} : vector<4x128xf32> to vector<1x128xf32>
    %41 = vector.shape_cast %40 : vector<1x128xf32> to vector<1x128xf32>
    %42 = vector.broadcast %41 : vector<1x128xf32> to vector<8x128xf32>
    %43 = arith.negf %30 : vector<8x128xf32>
    %44 = math.exp %43 : vector<8x128xf32>
    %cst = arith.constant 1.000000e+00 : f32
    %45 = vector.broadcast %cst : f32 to vector<8x128xf32>
    %46 = arith.addf %45, %44 : vector<8x128xf32>
    %47 = arith.divf %45, %46 : vector<8x128xf32>
    %48 = vector.extract_strided_slice %47 {offsets = [0, 0], sizes = [8, 1], strides = [1, 1]} : vector<8x128xf32> to vector<8x1xf32>
    %49 = vector.broadcast %48 : vector<8x1xf32> to vector<8x128xf32>
    %50 = arith.mulf %49, %33 : vector<8x128xf32>
    %51 = arith.addf %30, %50 : vector<8x128xf32>
    %52 = vector.extract_strided_slice %47 {offsets = [0, 1], sizes = [8, 1], strides = [1, 1]} : vector<8x128xf32> to vector<8x1xf32>
    %53 = vector.broadcast %52 : vector<8x1xf32> to vector<8x128xf32>
    %54 = arith.mulf %53, %36 : vector<8x128xf32>
    %55 = arith.addf %51, %54 : vector<8x128xf32>
    %56 = vector.extract_strided_slice %47 {offsets = [0, 2], sizes = [8, 1], strides = [1, 1]} : vector<8x128xf32> to vector<8x1xf32>
    %57 = vector.broadcast %56 : vector<8x1xf32> to vector<8x128xf32>
    %58 = arith.mulf %57, %39 : vector<8x128xf32>
    %59 = arith.addf %55, %58 : vector<8x128xf32>
    %60 = vector.extract_strided_slice %47 {offsets = [0, 3], sizes = [8, 1], strides = [1, 1]} : vector<8x128xf32> to vector<8x1xf32>
    %61 = vector.broadcast %60 : vector<8x1xf32> to vector<8x128xf32>
    %62 = arith.mulf %61, %42 : vector<8x128xf32>
    %63 = arith.addf %59, %62 : vector<8x128xf32>
    %64 = arith.negf %63 : vector<8x128xf32>
    %65 = math.exp %64 : vector<8x128xf32>
    %cst_3 = arith.constant 1.000000e+00 : f32
    %66 = vector.broadcast %cst_3 : f32 to vector<8x128xf32>
    %67 = arith.addf %66, %65 : vector<8x128xf32>
    %68 = arith.divf %66, %67 : vector<8x128xf32>
    %69 = vector.extract_strided_slice %68 {offsets = [0, 0], sizes = [8, 1], strides = [1, 1]} : vector<8x128xf32> to vector<8x1xf32>
    %70 = vector.broadcast %69 : vector<8x1xf32> to vector<8x128xf32>
    %71 = arith.mulf %70, %33 : vector<8x128xf32>
    %72 = arith.addf %30, %71 : vector<8x128xf32>
    %73 = vector.extract_strided_slice %68 {offsets = [0, 1], sizes = [8, 1], strides = [1, 1]} : vector<8x128xf32> to vector<8x1xf32>
    %74 = vector.broadcast %73 : vector<8x1xf32> to vector<8x128xf32>
    %75 = arith.mulf %74, %36 : vector<8x128xf32>
    %76 = arith.addf %72, %75 : vector<8x128xf32>
    %77 = vector.extract_strided_slice %68 {offsets = [0, 2], sizes = [8, 1], strides = [1, 1]} : vector<8x128xf32> to vector<8x1xf32>
    %78 = vector.broadcast %77 : vector<8x1xf32> to vector<8x128xf32>
    %79 = arith.mulf %78, %39 : vector<8x128xf32>
    %80 = arith.addf %76, %79 : vector<8x128xf32>
    %81 = vector.extract_strided_slice %68 {offsets = [0, 3], sizes = [8, 1], strides = [1, 1]} : vector<8x128xf32> to vector<8x1xf32>
    %82 = vector.broadcast %81 : vector<8x1xf32> to vector<8x128xf32>
    %83 = arith.mulf %82, %42 : vector<8x128xf32>
    %84 = arith.addf %80, %83 : vector<8x128xf32>
    %85 = arith.negf %84 : vector<8x128xf32>
    %86 = math.exp %85 : vector<8x128xf32>
    %cst_4 = arith.constant 1.000000e+00 : f32
    %87 = vector.broadcast %cst_4 : f32 to vector<8x128xf32>
    %88 = arith.addf %87, %86 : vector<8x128xf32>
    %89 = arith.divf %87, %88 : vector<8x128xf32>
    %90 = vector.extract_strided_slice %89 {offsets = [0, 0], sizes = [8, 1], strides = [1, 1]} : vector<8x128xf32> to vector<8x1xf32>
    %91 = vector.broadcast %90 : vector<8x1xf32> to vector<8x128xf32>
    %92 = arith.mulf %91, %33 : vector<8x128xf32>
    %93 = arith.addf %30, %92 : vector<8x128xf32>
    %94 = vector.extract_strided_slice %89 {offsets = [0, 1], sizes = [8, 1], strides = [1, 1]} : vector<8x128xf32> to vector<8x1xf32>
    %95 = vector.broadcast %94 : vector<8x1xf32> to vector<8x128xf32>
    %96 = arith.mulf %95, %36 : vector<8x128xf32>
    %97 = arith.addf %93, %96 : vector<8x128xf32>
    %98 = vector.extract_strided_slice %89 {offsets = [0, 2], sizes = [8, 1], strides = [1, 1]} : vector<8x128xf32> to vector<8x1xf32>
    %99 = vector.broadcast %98 : vector<8x1xf32> to vector<8x128xf32>
    %100 = arith.mulf %99, %39 : vector<8x128xf32>
    %101 = arith.addf %97, %100 : vector<8x128xf32>
    %102 = vector.extract_strided_slice %89 {offsets = [0, 3], sizes = [8, 1], strides = [1, 1]} : vector<8x128xf32> to vector<8x1xf32>
    %103 = vector.broadcast %102 : vector<8x1xf32> to vector<8x128xf32>
    %104 = arith.mulf %103, %42 : vector<8x128xf32>
    %105 = arith.addf %101, %104 : vector<8x128xf32>
    %c0_5 = arith.constant 0 : index
    %c0_6 = arith.constant 0 : index
    %106 = vector.load %arg3[%c0_5, %c0_6] : memref<8x128xf32, #tpu.memory_space<vmem>>, vector<8x128xf32>
    tpu.vector_store %arg3[%c0_5, %c0_6], %105 {strides = array<i32>} : memref<8x128xf32, #tpu.memory_space<vmem>>, vector<8x128xf32>,
    return
  }
  func.func @transform_0(%arg0: i32) -> (i32, i32) {
    %c0_i32 = arith.constant 0 : i32
    %c0_i32_0 = arith.constant 0 : i32
    %c0_i32_1 = arith.constant 0 : i32
    return %c0_i32, %c0_i32_0 : i32, i32
  }
  func.func @transform_1(%arg0: i32) -> (i32, i32) {
    %c0_i32 = arith.constant 0 : i32
    %c0_i32_0 = arith.constant 0 : i32
    return %arg0, %c0_i32 : i32, i32
  }
  func.func @transform_2(%arg0: i32) -> (i32, i32) {
    %c0_i32 = arith.constant 0 : i32
    %c0_i32_0 = arith.constant 0 : i32
    return %arg0, %c0_i32 : i32, i32
  }
}

</mosaic_0001>

<llo_original>
// kernel: tpu_custom_call.1
$region0: #{tpu_custom_call.1}
  #allocation0 [shape = 'u32[]', space=smem, size = 0x4, offset = 0x4, fixed_abs, tag = 'smem constant byte address 0x4 - core index']
  #allocation1 [shape = 'u32[144,128]{1,0:T(1,128)}', space=vmem, size = 0x12000, scoped, tag = 'internal scratch']
  %s0 = inlined_call_operand.hbm [shape: f32[16,128], index: 0, kind: input, shape index: {}]
  %s1 = inlined_call_operand.hbm [shape: f32[8,128], index: 1, kind: input, shape index: {}]
  %s2 = inlined_call_operand.hbm [shape: f32[8,128], index: 2, kind: output, shape index: {}]
  %s3 = sld [smem:[#allocation0]]
  $region26: #{tpu_custom_call.1} parent=0
    _
  %s5 = ssub.s32 1, %s3
  %s6 = scalar_select 0, %s5, %s3
  $region1: #{tpu_custom_call.1} parent=0
    #allocation2 [shape = 'u8[8192]{0}', space=vmem, size = 0x2000, scoped, tag = 'input window, operand 0, single buffered']
    #allocation3 [shape = 's32[1]{0}', space=sflag, size = 0x4, scoped, tag = 'scoped memory for tpu_custom_call.1']
    #allocation4 [shape = 's32[1]{0}', space=sflag, size = 0x4, scoped, tag = 'scoped memory for tpu_custom_call.1']
    #allocation5 [shape = 'u8[4096]{0}', space=vmem, size = 0x1000, scoped, tag = 'input window, operand 1, single buffered']
    #allocation6 [shape = 's32[1]{0}', space=sflag, size = 0x4, scoped, tag = 'scoped memory for tpu_custom_call.1']
    #allocation7 [shape = 'u8[4096]{0}', space=vmem, size = 0x1000, scoped, tag = 'output window, operand 0, single buffered']
    %7 = vsyncpa [#allocation3], 0
    %8 = vsyncpa [#allocation6], 0
    %9 = vsyncpa [#allocation4], 0
    // Predicated region
    $region2: #{tpu_custom_call.1} parent=1 // pred_check
      _
    $region3: #{tpu_custom_call.1} parent=1 // pred_check_branch
      %11 = sbr.rel (0) target = $region5
    $region4: #{tpu_custom_call.1} parent=1 // pred_region
      %s13 = ssub.s32 256, 256
      %14 = vsyncadd [#allocation3], %s13
      %s15 = sshll.u32 [#allocation2], 4
      %s16 = int_to_ptr.vmem [resolvable:$true] %s15
      %21 = dma.hbm_to_vmem [thread:$0]  %s0, 256, %s16, [#allocation3], 128, 128, 8
    $region5: #{tpu_custom_call.1} parent=1 // pred_fallthru
      _
    // Predicated region
    $region6: #{tpu_custom_call.1} parent=1 // pred_check
      _
    $region7: #{tpu_custom_call.1} parent=1 // pred_check_branch
      %23 = sbr.rel (0) target = $region9
    $region8: #{tpu_custom_call.1} parent=1 // pred_region
      %s25 = ssub.s32 128, 128
      %26 = vsyncadd [#allocation6], %s25
      %s28 = sshll.u32 [#allocation5], 4
      %s29 = int_to_ptr.vmem [resolvable:$true] %s28
      %31 = dma.hbm_to_vmem [thread:$0]  %s1, 128, %s29, [#allocation6]
    $region9: #{tpu_custom_call.1} parent=1 // pred_fallthru
      _
    // Predicated region
    $region10: #{tpu_custom_call.1} parent=1 // pred_check
      _
    $region11: #{tpu_custom_call.1} parent=1 // pred_check_branch
      %33 = sbr.rel (0) target = $region13
    $region12: #{tpu_custom_call.1} parent=1 // pred_region
      %34 = dma.done [#allocation3], 256
    $region13: #{tpu_custom_call.1} parent=1 // pred_fallthru
      _
    // Predicated region
    $region14: #{tpu_custom_call.1} parent=1 // pred_check
      _
    $region15: #{tpu_custom_call.1} parent=1 // pred_check_branch
      %36 = sbr.rel (0) target = $region17
    $region16: #{tpu_custom_call.1} parent=1 // pred_region
      %37 = dma.done [#allocation6], 128
    $region17: #{tpu_custom_call.1} parent=1 // pred_fallthru
      _
    %v38 = vld [vmem:[#allocation2] sm:$0xff]
    %v39 = vld [vmem:[#allocation2 + $0x8] sm:$0xff]
    %v40 = vld [vmem:[#allocation5] sm:$0xff]
    %v41 = vlaneseq
    %v42 = vshrl.u32 %v41, 7
    %v43 = vsub.s32 0, %v42
    %v44 = vrot.slane %v39, %v43
    %46 = vset.pattern.permute.xlu0 0
    %47 = vperm.xlu0 %46, %v40
    %v48 = vpop.permute.xlu0 %47
    %v50 = vlaneseq
    %v51 = vshrl.u32 %v50, 7
    %v52 = vsub.s32 0, %v51
    %v53 = vrot.slane %v38, %v52
    %v54 = vmul.f32 %v48, %v53
    %v55 = vadd.f32 %v44, %v54
    %56 = vset.pattern.permute.xlu0 1
    %57 = vperm.xlu0 %56, %v40
    %v58 = vpop.permute.xlu0 %57
    %v60 = vlaneseq
    %v61 = vshrl.u32 %v60, 7
    %v62 = vsub.s32 1, %v61
    %v63 = vrot.slane %v38, %v62
    %v64 = vmul.f32 %v58, %v63
    %v65 = vadd.f32 %v55, %v64
    %66 = vset.pattern.permute.xlu0 2
    %67 = vperm.xlu0 %66, %v40
    %v68 = vpop.permute.xlu0 %67
    %v70 = vlaneseq
    %v71 = vshrl.u32 %v70, 7
    %v72 = vsub.s32 2, %v71
    %v73 = vrot.slane %v38, %v72
    %v74 = vmul.f32 %v68, %v73
    %v75 = vadd.f32 %v65, %v74
    %76 = vset.pattern.permute.xlu0 3
    %77 = vperm.xlu0 %76, %v40
    %v78 = vpop.permute.xlu0 %77
    %v80 = vlaneseq
    %v81 = vshrl.u32 %v80, 7
    %v82 = vsub.s32 3, %v81
    %v83 = vrot.slane %v38, %v82
    %v84 = vmul.f32 %v78, %v83
    %v85 = vadd.f32 %v75, %v84
    %v86 = vlaneseq
    %v87 = vshrl.u32 %v86, 7
    %v88 = vsub.s32 4, %v87
    %v89 = vrot.slane %v38, %v88
    %v90 = vlaneseq
    %v91 = vshrl.u32 %v90, 7
    %v92 = vsub.s32 5, %v91
    %v93 = vrot.slane %v38, %v92
    %v94 = vlaneseq
    %v95 = vshrl.u32 %v94, 7
    %v96 = vsub.s32 6, %v95
    %v97 = vrot.slane %v38, %v96
    %v98 = vlaneseq
    %v99 = vshrl.u32 %v98, 7
    %v100 = vsub.s32 7, %v99
    %v101 = vrot.slane %v38, %v100
    %v102 = vxor.u32 %v85, 2147483648
    %v103 = vmul.f32 %v102, 1.442695
    %v104 = vpow.pop %v103
    %v105 = vadd.f32 %v104, 1.0
    %v106 = vrcp.pop %v105
    %v107 = vmul.f32 1.0, %v106
    %109 = vset.pattern.permute.xlu0 0
    %110 = vperm.xlu0 %109, %v107
    %v111 = vpop.permute.xlu0 %110
    %v113 = vmul.f32 %v111, %v89
    %v114 = vadd.f32 %v85, %v113
    %115 = vset.pattern.permute.xlu0 1
    %116 = vperm.xlu0 %115, %v107
    %v117 = vpop.permute.xlu0 %116
    %v119 = vmul.f32 %v117, %v93
    %v120 = vadd.f32 %v114, %v119
    %121 = vset.pattern.permute.xlu0 2
    %122 = vperm.xlu0 %121, %v107
    %v123 = vpop.permute.xlu0 %122
    %v125 = vmul.f32 %v123, %v97
    %v126 = vadd.f32 %v120, %v125
    %127 = vset.pattern.permute.xlu0 3
    %128 = vperm.xlu0 %127, %v107
    %v129 = vpop.permute.xlu0 %128
    %v131 = vmul.f32 %v129, %v101
    %v132 = vadd.f32 %v126, %v131
    %v133 = vxor.u32 %v132, 2147483648
    %v134 = vmul.f32 %v133, 1.442695
    %v135 = vpow.pop %v134
    %v136 = vadd.f32 %v135, 1.0
    %v137 = vrcp.pop %v136
    %v138 = vmul.f32 1.0, %v137
    %140 = vset.pattern.permute.xlu0 0
    %141 = vperm.xlu0 %140, %v138
    %v142 = vpop.permute.xlu0 %141
    %v144 = vmul.f32 %v142, %v89
    %v145 = vadd.f32 %v85, %v144
    %146 = vset.pattern.permute.xlu0 1
    %147 = vperm.xlu0 %146, %v138
    %v148 = vpop.permute.xlu0 %147
    %v150 = vmul.f32 %v148, %v93
    %v151 = vadd.f32 %v145, %v150
    %152 = vset.pattern.permute.xlu0 2
    %153 = vperm.xlu0 %152, %v138
    %v154 = vpop.permute.xlu0 %153
    %v156 = vmul.f32 %v154, %v97
    %v157 = vadd.f32 %v151, %v156
    %158 = vset.pattern.permute.xlu0 3
    %159 = vperm.xlu0 %158, %v138
    %v160 = vpop.permute.xlu0 %159
    %v162 = vmul.f32 %v160, %v101
    %v163 = vadd.f32 %v157, %v162
    %v164 = vxor.u32 %v163, 2147483648
    %v165 = vmul.f32 %v164, 1.442695
    %v166 = vpow.pop %v165
    %v167 = vadd.f32 %v166, 1.0
    %v168 = vrcp.pop %v167
    %v169 = vmul.f32 1.0, %v168
    %171 = vset.pattern.permute.xlu0 0
    %172 = vperm.xlu0 %171, %v169
    %v173 = vpop.permute.xlu0 %172
    %v175 = vmul.f32 %v173, %v89
    %v176 = vadd.f32 %v85, %v175
    %177 = vset.pattern.permute.xlu0 1
    %178 = vperm.xlu0 %177, %v169
    %v179 = vpop.permute.xlu0 %178
    %v181 = vmul.f32 %v179, %v93
    %v182 = vadd.f32 %v176, %v181
    %183 = vset.pattern.permute.xlu0 2
    %184 = vperm.xlu0 %183, %v169
    %v185 = vpop.permute.xlu0 %184
    %v187 = vmul.f32 %v185, %v97
    %v188 = vadd.f32 %v182, %v187
    %189 = vset.pattern.permute.xlu0 3
    %190 = vperm.xlu0 %189, %v169
    %v191 = vpop.permute.xlu0 %190
    %v193 = vmul.f32 %v191, %v101
    %v194 = vadd.f32 %v188, %v193
    %195 = vst [vmem:[#allocation7] sm:$0xff] %v194
    // Predicated region
    $region18: #{tpu_custom_call.1} parent=1 // pred_check
      _
    $region19: #{tpu_custom_call.1} parent=1 // pred_check_branch
      %197 = sbr.rel (0) target = $region21
    $region20: #{tpu_custom_call.1} parent=1 // pred_region
      %s199 = ssub.s32 128, 128
      %200 = vsyncadd [#allocation4], %s199
      %s202 = sshll.u32 [#allocation7], 4
      %s203 = int_to_ptr.vmem [resolvable:$true] %s202
      %205 = dma.vmem_to_hbm [thread:$0]  %s203, 128, %s2, [#allocation4]
    $region21: #{tpu_custom_call.1} parent=1 // pred_fallthru
      _
    // Predicated region
    $region22: #{tpu_custom_call.1} parent=1 // pred_check
      _
    $region23: #{tpu_custom_call.1} parent=1 // pred_check_branch
      %207 = sbr.rel (0) target = $region25
    $region24: #{tpu_custom_call.1} parent=1 // pred_region
      %208 = dma.done [#allocation4], 128
    $region25: #{tpu_custom_call.1} parent=1 // pred_fallthru
      _
    %209 = vsyncpa [#allocation3], 1
    %210 = vsyncpa [#allocation6], 1
    %211 = vsyncpa [#allocation4], 1

</llo_original>
